<compile_context>
chip_gen: v7x
topology: tpu7x:2x2x1
jax: 0.10.0
libtpu: 0.0.40
codegen_flags: <defaults>
</compile_context>

<pallas_src>
import jax
import jax.numpy as jnp
from jax.experimental import pallas as pl
from jax.experimental.pallas import tpu as pltpu

_EPS = 1e-10

# ---- padded sizes / slab layout (zero padding is exact for linear+ReLU) ----
C_IN = 4            # conv input channels
C_H = 24            # conv hidden channels 20 -> 24

# f32 conv "tail" slab (32, 24): w1 / biases / w4 row / b4
_CONV_ROWS = 32
_W4_ROW = 24        # row holding the (1, 24) layer-4 weight row
_B4_ROW = 25        # row holding b4 at column 0

_TN_MAX = 16384     # per-tile lane width.  Per-tile live set (inputs + (24,TN)
                    # intermediates + double buffers) is ~5-7 MiB -> inside the
                    # 32 MiB scoped default everywhere and well under v7x's
                    # 64 MiB physical VMEM.  v5e/v6e could go to 32768 with
                    # vmem_limit_bytes raised, but 16384 stays portable.


def _pick_act_bf16():
    """bf16 activations on chips with a bf16 VPU (v6e / v7x); f32 on v5e/older."""
    try:
        kind = jax.devices()[0].device_kind.lower()
    except Exception:
        return False
    for old in ("v2", "v3", "v4", "v5"):
        if old in kind:
            return False
    return True


_ACT_BF16 = _pick_act_bf16()


def _make_kernel(act_bf16):
    f32 = jnp.float32
    bf16 = jnp.bfloat16
    adt = bf16 if act_bf16 else f32

    def kernel(scal_ref, xc_ref, xp_ref, g_ref, pvec_ref, w23_ref, conv_ref, out_ref):
        # SMEM scalars: coefficient-MLP outputs with the grad/diff norm scales
        # already folded in, plus 1/sqrt(1 + iteration).
        c0g = scal_ref[0]           # c0 * gscale
        c1d = scal_ref[1]           # c1 * dscale
        c2g = scal_ref[2]           # c2 * gscale
        c3d = scal_ref[3]           # c3 * dscale
        inv_sqrt_step = scal_ref[4]

        x_curr = xc_ref[...]                      # (1, TN) f32
        grad = g_ref[...]                         # (1, TN) f32
        diff = x_curr - xp_ref[...]               # (1, TN) f32
        gparam = pvec_ref[0:1, :]                 # gradient parameter
        eparam = pvec_ref[1:2, :]                 # extrapolation parameter

        # per-coordinate input channels (coefficient * norm-scale folded into scalars)
        ch0 = ((c0g * gparam) * grad).astype(adt)
        ch1 = ((c1d * eparam) * diff).astype(adt)
        ch2 = (c2g * grad).astype(adt)
        ch3 = (c3d * diff).astype(adt)

        cf = conv_ref[...]                        # (32, 24) f32
        w1 = cf[0:C_H, 0:C_IN].astype(adt)        # (24, 4)
        b1 = cf[0:C_H, 4:5].astype(adt)           # (24, 1)
        b2 = cf[0:C_H, 5:6].astype(adt)
        b3 = cf[0:C_H, 6:7].astype(adt)
        w4 = cf[_W4_ROW:_W4_ROW + 1, 0:C_H].astype(adt)   # (1, 24)
        b4 = cf[_B4_ROW:_B4_ROW + 1, 0:1]                 # (1, 1) f32

        w2 = w23_ref[0:C_H, :]                    # (24, 24) bf16 (pre-cast)
        w3 = w23_ref[C_H:2 * C_H, :]              # (24, 24) bf16

        # conv layer 1: four rank-1 broadcast-FMAs (no dead padded input channels)
        h1 = jnp.maximum(w1[:, 0:1] * ch0 + w1[:, 1:2] * ch1
                         + w1[:, 2:3] * ch2 + w1[:, 3:4] * ch3 + b1, 0.0)  # (24, TN) adt
        h1m = h1 if act_bf16 else h1.astype(bf16)

        # conv layers 2/3: bf16 MXU matmuls with f32 accumulation; bias/ReLU in adt
        h2 = jnp.maximum(
            jnp.dot(w2, h1m, preferred_element_type=f32).astype(adt) + b2, 0.0)
        h2m = h2 if act_bf16 else h2.astype(bf16)
        h3 = jnp.maximum(
            jnp.dot(w3, h2m, preferred_element_type=f32).astype(adt) + b3, 0.0)

        # conv layer 4: (1,24) x (24,TN) dot, f32 accumulation
        direction = jnp.dot(w4, h3, preferred_element_type=f32) + b4          # (1, TN)

        out_ref[...] = x_curr + direction * inv_sqrt_step

    return kernel


# --------------------------- host-side helpers ------------------------------

def _round_up(x, m):
    return ((x + m - 1) // m) * m


def _cdiv(a, b):
    return -(-a // b)


def _tiling(dim):
    """Padded total width dp and tile width tn (tn | dp, tn % 128 == 0)."""
    dp0 = _round_up(dim, 128)
    if dp0 <= _TN_MAX:
        return dp0, dp0
    ntiles = _cdiv(dp0, _TN_MAX)
    if ntiles % 2:
        ntiles += 1           # even tile count so v7x's two TensorCores split evenly
    tn = _round_up(_cdiv(dp0, ntiles), 128)
    return ntiles * tn, tn


def _pad_row(v, dp):
    v = v.reshape(1, -1)
    if v.shape[1] == dp:
        return v
    return jnp.pad(v, ((0, 0), (0, dp - v.shape[1])))


def _pad_cols(a, dp):
    if a.shape[1] == dp:
        return a
    if a.shape[1] > dp:
        return a[:, :dp]
    return jnp.pad(a, ((0, 0), (0, dp - a.shape[1])))


def _linear_init(key, fan_in, fan_out):
    """Deterministic stand-in for PyTorch's default Linear/Conv2d(k=1) init."""
    kw, kb = jax.random.split(key)
    bound = 1.0 / (fan_in ** 0.5)
    w = jax.random.uniform(kw, (fan_out, fan_in), jnp.float32, -bound, bound)
    b = jax.random.uniform(kb, (fan_out,), jnp.float32, -bound, bound)
    return w, b


def init_params(dim, seed=0):
    keys = jax.random.split(jax.random.PRNGKey(seed), 8)
    p = {
        "extrapolation": 0.001 * jnp.ones((dim,), jnp.float32),
        "gradient": 0.001 * jnp.ones((dim,), jnp.float32),
    }
    # update_layer: Conv2d(4,20,1) -> Conv2d(20,20,1) -> Conv2d(20,20,1) -> Conv2d(20,1,1)
    p["uw1"], p["ub1"] = _linear_init(keys[0], 4, 20)
    p["uw2"], p["ub2"] = _linear_init(keys[1], 20, 20)
    p["uw3"], p["ub3"] = _linear_init(keys[2], 20, 20)
    p["uw4"], p["ub4"] = _linear_init(keys[3], 20, 1)
    # coefficients: Linear(6,30) -> Linear(30,20) -> Linear(20,10) -> Linear(10,4)
    p["cw1"], p["cb1"] = _linear_init(keys[4], 6, 30)
    p["cw2"], p["cb2"] = _linear_init(keys[5], 30, 20)
    p["cw3"], p["cb3"] = _linear_init(keys[6], 20, 10)
    p["cw4"], p["cb4"] = _linear_init(keys[7], 10, 4)
    return p


def prepare_params(params):
    """One-time packing (done once, NOT per optimizer step)."""
    f32 = jnp.float32
    dim = params["gradient"].shape[0]
    dp, _ = _tiling(dim)

    # bf16 slab for the two hidden 20x20 (padded 24x24) 1x1-conv layers
    w23 = jnp.zeros((2 * C_H, C_H), f32)
    w23 = w23.at[0:20, 0:20].set(params["uw2"].astype(f32))
    w23 = w23.at[C_H:C_H + 20, 0:20].set(params["uw3"].astype(f32))
    w23 = w23.astype(jnp.bfloat16)

    # f32 tail slab: w1 (24,4) | b1 | b2 | b3 in cols 4..6, w4 row, b4
    conv = jnp.zeros((_CONV_ROWS, C_H), f32)
    conv = conv.at[0:20, 0:4].set(params["uw1"].astype(f32))
    conv = conv.at[0:20, 4].set(params["ub1"].astype(f32))
    conv = conv.at[0:20, 5].set(params["ub2"].astype(f32))
    conv = conv.at[0:20, 6].set(params["ub3"].astype(f32))
    conv = conv.at[_W4_ROW, 0:20].set(params["uw4"][0, :].astype(f32))
    conv = conv.at[_B4_ROW, 0].set(params["ub4"][0].astype(f32))

    # step-invariant per-coordinate parameters, padded once
    pvec = jnp.zeros((2, dp), f32)
    pvec = pvec.at[0, :dim].set(params["gradient"].astype(f32))
    pvec = pvec.at[1, :dim].set(params["extrapolation"].astype(f32))

    # coefficient-MLP weights stay unpacked: the tiny MLP runs as plain XLA
    coef = {k: params[k].astype(f32) for k in
            ("cw1", "cb1", "cw2", "cb2", "cw3", "cb3", "cw4", "cb4")}
    return {"w23_bf16": w23, "conv_f32": conv, "pvec": pvec, "coef": coef}


def _step_impl(prep, x_prev, x_curr, grad, loss_prev, loss_curr, iteration):
    f32 = jnp.float32
    dim = x_curr.shape[0]
    dp, tn = _tiling(dim)
    grid = dp // tn

    x_curr = x_curr.astype(f32)
    x_prev = x_prev.astype(f32)
    g = grad.astype(f32)
    d = x_curr - x_prev           # only feeds fused reductions below

    # cross-vector reductions as fused XLA reductions feeding the SMEM scalars
    gnorm = jnp.sqrt(jnp.sum(g * g))
    dnorm = jnp.sqrt(jnp.sum(d * d))
    gscale = jnp.where(gnorm > _EPS, 1.0 / gnorm, 1.0)
    dscale = jnp.where(dnorm > _EPS, 1.0 / dnorm, 1.0)
    gd_feat = jnp.sum(g * d) * (gscale * dscale)
    gmax_feat = jnp.max(jnp.abs(g)) * gscale
    it_f = jnp.asarray(iteration, f32)
    loss_diff = jnp.log(jnp.asarray(loss_curr, f32)) - jnp.log(jnp.asarray(loss_prev, f32))
    inv_sqrt_step = jax.lax.rsqrt(1.0 + it_f)

    # tiny coefficient MLP (6->30->20->10->4) runs as plain XLA in the wrapper
    coef = prep["coef"]
    hp = jax.lax.Precision.HIGHEST
    feat = jnp.stack([jnp.log1p(gnorm), jnp.log1p(dnorm), gd_feat,
                      gmax_feat, it_f, loss_diff])
    h = jax.nn.relu(jnp.dot(coef["cw1"], feat, precision=hp) + coef["cb1"])
    h = jax.nn.relu(jnp.dot(coef["cw2"], h, precision=hp) + coef["cb2"])
    h = jax.nn.relu(jnp.dot(coef["cw3"], h, precision=hp) + coef["cb3"])
    c = jnp.dot(coef["cw4"], h, precision=hp) + coef["cb4"]          # (4,)

    scalars = jnp.zeros((8,), f32)
    scalars = scalars.at[0].set(c[0] * gscale)
    scalars = scalars.at[1].set(c[1] * dscale)
    scalars = scalars.at[2].set(c[2] * gscale)
    scalars = scalars.at[3].set(c[3] * dscale)
    scalars = scalars.at[4].set(inv_sqrt_step)

    xc = _pad_row(x_curr, dp)
    xp = _pad_row(x_prev, dp)
    gr = _pad_row(g, dp)
    pvec = _pad_cols(prep["pvec"], dp)   # pre-padded at prepare time; no-op normally

    kernel = _make_kernel(_ACT_BF16)
    out = pl.pallas_call(
        kernel,
        out_shape=jax.ShapeDtypeStruct((1, dp), f32),
        grid=(grid,),
        in_specs=[
            pl.BlockSpec(memory_space=pltpu.MemorySpace.SMEM),         # scalars
            pl.BlockSpec((1, tn), lambda i: (0, i)),                   # x_curr tile
            pl.BlockSpec((1, tn), lambda i: (0, i)),                   # x_prev tile
            pl.BlockSpec((1, tn), lambda i: (0, i)),                   # grad tile
            pl.BlockSpec((2, tn), lambda i: (0, i)),                   # (grad,extrap) params
            pl.BlockSpec((2 * C_H, C_H), lambda i: (0, 0)),            # w2/w3 bf16 (resident)
            pl.BlockSpec((_CONV_ROWS, C_H), lambda i: (0, 0)),         # f32 tail (resident)
        ],
        out_specs=pl.BlockSpec((1, tn), lambda i: (0, i)),
        compiler_params=pltpu.CompilerParams(
            dimension_semantics=("parallel",)),
        cost_estimate=pl.CostEstimate(
            flops=int((2 * 2 * C_H * C_H + 2 * C_H * (C_IN + 1) + 2 * C_H + 16) * dp),
            transcendentals=0,
            bytes_accessed=int(24 * dp)),
    )(scalars, xc, xp, gr, pvec, prep["w23_bf16"], prep["conv_f32"])
    return out[0, :dim]


learned_algorithm_step = jax.jit(_step_impl)


def reference_step(params, x_prev, x_curr, grad, loss_prev, loss_curr, iteration):
    """Pure-JAX reference mirroring the PyTorch forward."""
    hp = jax.lax.Precision.HIGHEST
    g = grad.astype(jnp.float32)
    gnorm = jnp.linalg.norm(g)
    g = g * jnp.where(gnorm > _EPS, 1.0 / gnorm, 1.0)
    d = (x_curr - x_prev).astype(jnp.float32)
    dnorm = jnp.linalg.norm(d)
    d = d * jnp.where(dnorm > _EPS, 1.0 / dnorm, 1.0)
    feat = jnp.stack([jnp.log(1.0 + gnorm), jnp.log(1.0 + dnorm),
                      jnp.dot(g, d, precision=hp), jnp.max(jnp.abs(g)),
                      jnp.float32(iteration),
                      jnp.log(jnp.float32(loss_curr)) - jnp.log(jnp.float32(loss_prev))])

    def lin(w, b, x):
        return jnp.dot(w, x, precision=hp) + b

    h = jax.nn.relu(lin(params["cw1"], params["cb1"], feat))
    h = jax.nn.relu(lin(params["cw2"], params["cb2"], h))
    h = jax.nn.relu(lin(params["cw3"], params["cb3"], h))
    c = lin(params["cw4"], params["cb4"], h)                           # (4,)

    x_ch = jnp.stack([c[0] * params["gradient"] * g,
                      c[1] * params["extrapolation"] * d,
                      c[2] * g,
                      c[3] * d], axis=0)                               # (4, dim)
    h = jax.nn.relu(jnp.dot(params["uw1"], x_ch, precision=hp) + params["ub1"][:, None])
    h = jax.nn.relu(jnp.dot(params["uw2"], h, precision=hp) + params["ub2"][:, None])
    h = jax.nn.relu(jnp.dot(params["uw3"], h, precision=hp) + params["ub3"][:, None])
    direction = (jnp.dot(params["uw4"], h, precision=hp) + params["ub4"][:, None])[0]
    return x_curr + direction / jnp.sqrt(1.0 + jnp.float32(iteration))


if __name__ == "__main__":
    dim = 200                     # optimization-variable dimension (padded to 256 internally)
    key = jax.random.PRNGKey(0)
    k1, k2, k3 = jax.random.split(key, 3)
    x_prev = jax.random.normal(k1, (dim,), jnp.float32)
    x_curr = x_prev + 0.1 * jax.random.normal(k2, (dim,), jnp.float32)
    grad = jax.random.normal(k3, (dim,), jnp.float32)
    loss_prev = jnp.float32(1.3)
    loss_curr = jnp.float32(0.9)
    iteration = jnp.float32(5.0)

    params = init_params(dim, seed=0)
    prep = prepare_params(params)          # one-time weight packing (not per step)

    out = learned_algorithm_step(prep, x_prev, x_curr, grad,
                                 loss_prev, loss_curr, iteration)
    out = jax.block_until_ready(out)

    ref = reference_step(params, x_prev, x_curr, grad, loss_prev, loss_curr, iteration)
    assert out.shape == (dim,)
    assert bool(jnp.all(jnp.isfinite(out)))
    # tolerance covers the bf16 MXU / bf16-activation path in the conv stack
    if not jnp.allclose(out, ref, rtol=5e-2, atol=1e-2):
        err = float(jnp.max(jnp.abs(out - ref)))
        raise AssertionError(f"Pallas kernel does not match JAX reference (max abs err {err})")
    print("KERNEL_OK")
</pallas_src>

<mosaic_0001>
module attributes {stable_mosaic.version = 11 : i64} {
  func.func @kernel(%arg0: i32, %arg1: memref<8xf32, #tpu.memory_space<smem>>, %arg2: memref<1x256xf32, #tpu.memory_space<vmem>>, %arg3: memref<1x256xf32, #tpu.memory_space<vmem>>, %arg4: memref<1x256xf32, #tpu.memory_space<vmem>>, %arg5: memref<2x256xf32, #tpu.memory_space<vmem>>, %arg6: memref<48x24xbf16, #tpu.memory_space<vmem>>, %arg7: memref<32x24xf32, #tpu.memory_space<vmem>>, %arg8: memref<1x256xf32, #tpu.memory_space<vmem>>) attributes {dimension_semantics = [#tpu.dimension_semantics<parallel>], iteration_bounds = array<i64: 1>, scalar_prefetch = 0 : i64, scratch_operands = 0 : i64, tpu.core_type = #tpu.core_type<tc>, window_params = [{transform_indices = @transform_0, window_bounds = array<i64: 8>}, {transform_indices = @transform_1, window_bounds = array<i64: 1, 256>}, {transform_indices = @transform_2, window_bounds = array<i64: 1, 256>}, {transform_indices = @transform_3, window_bounds = array<i64: 1, 256>}, {transform_indices = @transform_4, window_bounds = array<i64: 2, 256>}, {pipeline_mode = #tpu.pipeline_mode<synchronous>, transform_indices = @transform_5, window_bounds = array<i64: 48, 24>}, {pipeline_mode = #tpu.pipeline_mode<synchronous>, transform_indices = @transform_6, window_bounds = array<i64: 32, 24>}, {transform_indices = @transform_7, window_bounds = array<i64: 1, 256>}]} {
    %c0 = arith.constant 0 : index
    %0 = memref.load %arg1[%c0] : memref<8xf32, #tpu.memory_space<smem>>
    %c1 = arith.constant 1 : index
    %1 = memref.load %arg1[%c1] : memref<8xf32, #tpu.memory_space<smem>>
    %c2 = arith.constant 2 : index
    %2 = memref.load %arg1[%c2] : memref<8xf32, #tpu.memory_space<smem>>
    %c3 = arith.constant 3 : index
    %3 = memref.load %arg1[%c3] : memref<8xf32, #tpu.memory_space<smem>>
    %c4 = arith.constant 4 : index
    %4 = memref.load %arg1[%c4] : memref<8xf32, #tpu.memory_space<smem>>
    %c0_0 = arith.constant 0 : index
    %c0_1 = arith.constant 0 : index
    %5 = vector.load %arg2[%c0_0, %c0_1] : memref<1x256xf32, #tpu.memory_space<vmem>>, vector<1x256xf32>
    %c0_2 = arith.constant 0 : index
    %c0_3 = arith.constant 0 : index
    %6 = vector.load %arg4[%c0_2, %c0_3] : memref<1x256xf32, #tpu.memory_space<vmem>>, vector<1x256xf32>
    %c0_4 = arith.constant 0 : index
    %c0_5 = arith.constant 0 : index
    %7 = vector.load %arg3[%c0_4, %c0_5] : memref<1x256xf32, #tpu.memory_space<vmem>>, vector<1x256xf32>
    %8 = arith.subf %5, %7 : vector<1x256xf32>
    %c0_6 = arith.constant 0 : index
    %c0_7 = arith.constant 0 : index
    %9 = vector.load %arg5[%c0_6, %c0_7] : memref<2x256xf32, #tpu.memory_space<vmem>>, vector<1x256xf32>
    %c1_8 = arith.constant 1 : index
    %c0_9 = arith.constant 0 : index
    %10 = vector.load %arg5[%c1_8, %c0_9] : memref<2x256xf32, #tpu.memory_space<vmem>>, vector<1x256xf32>
    %11 = vector.broadcast %0 : f32 to vector<1x256xf32>
    %12 = arith.mulf %11, %9 : vector<1x256xf32>
    %13 = arith.mulf %12, %6 : vector<1x256xf32>
    %14 = arith.truncf %13 : vector<1x256xf32> to vector<1x256xbf16>
    %15 = vector.broadcast %1 : f32 to vector<1x256xf32>
    %16 = arith.mulf %15, %10 : vector<1x256xf32>
    %17 = arith.mulf %16, %8 : vector<1x256xf32>
    %18 = arith.truncf %17 : vector<1x256xf32> to vector<1x256xbf16>
    %19 = vector.broadcast %2 : f32 to vector<1x256xf32>
    %20 = arith.mulf %19, %6 : vector<1x256xf32>
    %21 = arith.truncf %20 : vector<1x256xf32> to vector<1x256xbf16>
    %22 = vector.broadcast %3 : f32 to vector<1x256xf32>
    %23 = arith.mulf %22, %8 : vector<1x256xf32>
    %24 = arith.truncf %23 : vector<1x256xf32> to vector<1x256xbf16>
    %c0_10 = arith.constant 0 : index
    %c0_11 = arith.constant 0 : index
    %25 = vector.load %arg7[%c0_10, %c0_11] : memref<32x24xf32, #tpu.memory_space<vmem>>, vector<32x24xf32>
    %26 = vector.extract_strided_slice %25 {offsets = [0, 0], sizes = [24, 4], strides = [1, 1]} : vector<32x24xf32> to vector<24x4xf32>
    %27 = arith.truncf %26 : vector<24x4xf32> to vector<24x4xbf16>
    %28 = vector.extract_strided_slice %25 {offsets = [0, 4], sizes = [24, 1], strides = [1, 1]} : vector<32x24xf32> to vector<24x1xf32>
    %29 = arith.truncf %28 : vector<24x1xf32> to vector<24x1xbf16>
    %30 = vector.extract_strided_slice %25 {offsets = [0, 5], sizes = [24, 1], strides = [1, 1]} : vector<32x24xf32> to vector<24x1xf32>
    %31 = arith.truncf %30 : vector<24x1xf32> to vector<24x1xbf16>
    %32 = vector.extract_strided_slice %25 {offsets = [0, 6], sizes = [24, 1], strides = [1, 1]} : vector<32x24xf32> to vector<24x1xf32>
    %33 = arith.truncf %32 : vector<24x1xf32> to vector<24x1xbf16>
    %34 = vector.extract_strided_slice %25 {offsets = [24, 0], sizes = [1, 24], strides = [1, 1]} : vector<32x24xf32> to vector<1x24xf32>
    %35 = arith.truncf %34 : vector<1x24xf32> to vector<1x24xbf16>
    %36 = vector.extract_strided_slice %25 {offsets = [25, 0], sizes = [1, 1], strides = [1, 1]} : vector<32x24xf32> to vector<1x1xf32>
    %c0_12 = arith.constant 0 : index
    %c0_13 = arith.constant 0 : index
    %37 = vector.load %arg6[%c0_12, %c0_13] : memref<48x24xbf16, #tpu.memory_space<vmem>>, vector<24x24xbf16>
    %c24 = arith.constant 24 : index
    %c0_14 = arith.constant 0 : index
    %38 = vector.load %arg6[%c24, %c0_14] : memref<48x24xbf16, #tpu.memory_space<vmem>>, vector<24x24xbf16>
    %39 = vector.extract_strided_slice %27 {offsets = [0, 0], sizes = [24, 1], strides = [1, 1]} : vector<24x4xbf16> to vector<24x1xbf16>
    %40 = vector.broadcast %39 : vector<24x1xbf16> to vector<24x256xbf16>
    %41 = vector.broadcast %14 : vector<1x256xbf16> to vector<24x256xbf16>
    %42 = arith.mulf %40, %41 : vector<24x256xbf16>
    %43 = vector.extract_strided_slice %27 {offsets = [0, 1], sizes = [24, 1], strides = [1, 1]} : vector<24x4xbf16> to vector<24x1xbf16>
    %44 = vector.broadcast %43 : vector<24x1xbf16> to vector<24x256xbf16>
    %45 = vector.broadcast %18 : vector<1x256xbf16> to vector<24x256xbf16>
    %46 = arith.mulf %44, %45 : vector<24x256xbf16>
    %47 = arith.addf %42, %46 : vector<24x256xbf16>
    %48 = vector.extract_strided_slice %27 {offsets = [0, 2], sizes = [24, 1], strides = [1, 1]} : vector<24x4xbf16> to vector<24x1xbf16>
    %49 = vector.broadcast %48 : vector<24x1xbf16> to vector<24x256xbf16>
    %50 = vector.broadcast %21 : vector<1x256xbf16> to vector<24x256xbf16>
    %51 = arith.mulf %49, %50 : vector<24x256xbf16>
    %52 = arith.addf %47, %51 : vector<24x256xbf16>
    %53 = vector.extract_strided_slice %27 {offsets = [0, 3], sizes = [24, 1], strides = [1, 1]} : vector<24x4xbf16> to vector<24x1xbf16>
    %54 = vector.broadcast %53 : vector<24x1xbf16> to vector<24x256xbf16>
    %55 = vector.broadcast %24 : vector<1x256xbf16> to vector<24x256xbf16>
    %56 = arith.mulf %54, %55 : vector<24x256xbf16>
    %57 = arith.addf %52, %56 : vector<24x256xbf16>
    %58 = vector.broadcast %29 : vector<24x1xbf16> to vector<24x256xbf16>
    %59 = arith.addf %57, %58 : vector<24x256xbf16>
    %cst = arith.constant 0.000000e+00 : bf16
    %60 = vector.broadcast %cst : bf16 to vector<24x256xbf16>
    %61 = arith.maximumf %59, %60 : vector<24x256xbf16>
    %cst_15 = arith.constant dense<0.000000e+00> : vector<24x256xf32>
    %62 = tpu.matmul %37, %61, %cst_15 {dimension_numbers = #tpu.dot_dimension_numbers<[1], [0], [0], [1], [0, 0, 1, 1], [], []>} : vector<24x24xbf16>, vector<24x256xbf16>, vector<24x256xf32> -> vector<24x256xf32>
    %63 = arith.truncf %62 : vector<24x256xf32> to vector<24x256xbf16>
    %64 = vector.broadcast %31 : vector<24x1xbf16> to vector<24x256xbf16>
    %65 = arith.addf %63, %64 : vector<24x256xbf16>
    %cst_16 = arith.constant 0.000000e+00 : bf16
    %66 = vector.broadcast %cst_16 : bf16 to vector<24x256xbf16>
    %67 = arith.maximumf %65, %66 : vector<24x256xbf16>
    %cst_17 = arith.constant dense<0.000000e+00> : vector<24x256xf32>
    %68 = tpu.matmul %38, %67, %cst_17 {dimension_numbers = #tpu.dot_dimension_numbers<[1], [0], [0], [1], [0, 0, 1, 1], [], []>} : vector<24x24xbf16>, vector<24x256xbf16>, vector<24x256xf32> -> vector<24x256xf32>
    %69 = arith.truncf %68 : vector<24x256xf32> to vector<24x256xbf16>
    %70 = vector.broadcast %33 : vector<24x1xbf16> to vector<24x256xbf16>
    %71 = arith.addf %69, %70 : vector<24x256xbf16>
    %cst_18 = arith.constant 0.000000e+00 : bf16
    %72 = vector.broadcast %cst_18 : bf16 to vector<24x256xbf16>
    %73 = arith.maximumf %71, %72 : vector<24x256xbf16>
    %cst_19 = arith.constant dense<0.000000e+00> : vector<1x256xf32>
    %74 = tpu.matmul %35, %73, %cst_19 {dimension_numbers = #tpu.dot_dimension_numbers<[1], [0], [0], [1], [0, 0, 1, 1], [], []>} : vector<1x24xbf16>, vector<24x256xbf16>, vector<1x256xf32> -> vector<1x256xf32>
    %75 = vector.broadcast %36 : vector<1x1xf32> to vector<1x256xf32>
    %76 = arith.addf %74, %75 : vector<1x256xf32>
    %77 = vector.broadcast %4 : f32 to vector<1x256xf32>
    %78 = arith.mulf %76, %77 : vector<1x256xf32>
    %79 = arith.addf %5, %78 : vector<1x256xf32>
    %c0_20 = arith.constant 0 : index
    %c0_21 = arith.constant 0 : index
    %80 = vector.load %arg8[%c0_20, %c0_21] : memref<1x256xf32, #tpu.memory_space<vmem>>, vector<1x256xf32>
    tpu.vector_store %arg8[%c0_20, %c0_21], %79 {strides = array<i32>} : memref<1x256xf32, #tpu.memory_space<vmem>>, vector<1x256xf32>,
    return
  }
  func.func @transform_0(%arg0: i32) -> i32 {
    %c0_i32 = arith.constant 0 : i32
    %c0_i32_0 = arith.constant 0 : i32
    return %c0_i32 : i32
  }
  func.func @transform_1(%arg0: i32) -> (i32, i32) {
    %c0_i32 = arith.constant 0 : i32
    %c0_i32_0 = arith.constant 0 : i32
    return %c0_i32, %arg0 : i32, i32
  }
  func.func @transform_2(%arg0: i32) -> (i32, i32) {
    %c0_i32 = arith.constant 0 : i32
    %c0_i32_0 = arith.constant 0 : i32
    return %c0_i32, %arg0 : i32, i32
  }
  func.func @transform_3(%arg0: i32) -> (i32, i32) {
    %c0_i32 = arith.constant 0 : i32
    %c0_i32_0 = arith.constant 0 : i32
    return %c0_i32, %arg0 : i32, i32
  }
  func.func @transform_4(%arg0: i32) -> (i32, i32) {
    %c0_i32 = arith.constant 0 : i32
    %c0_i32_0 = arith.constant 0 : i32
    return %c0_i32, %arg0 : i32, i32
  }
  func.func @transform_5(%arg0: i32) -> (i32, i32) {
    %c0_i32 = arith.constant 0 : i32
    %c0_i32_0 = arith.constant 0 : i32
    %c0_i32_1 = arith.constant 0 : i32
    return %c0_i32, %c0_i32_0 : i32, i32
  }
  func.func @transform_6(%arg0: i32) -> (i32, i32) {
    %c0_i32 = arith.constant 0 : i32
    %c0_i32_0 = arith.constant 0 : i32
    %c0_i32_1 = arith.constant 0 : i32
    return %c0_i32, %c0_i32_0 : i32, i32
  }
  func.func @transform_7(%arg0: i32) -> (i32, i32) {
    %c0_i32 = arith.constant 0 : i32
    %c0_i32_0 = arith.constant 0 : i32
    return %c0_i32, %arg0 : i32, i32
  }
}

</mosaic_0001>

<llo_original>
// kernel: _step_impl.1
$region0: #{_step_impl.1}
  #allocation0 [shape = 'u32[]', space=smem, size = 0x4, offset = 0x4, fixed_abs, tag = 'smem constant byte address 0x4 - core index']
  #allocation1 [shape = 'u32[144,128]{1,0:T(1,128)}', space=vmem, size = 0x12000, scoped, tag = 'internal scratch']
  %s0 = inlined_call_operand.vmem [shape: f32[8], index: 0, kind: input, shape index: {}]
  %s1 = inlined_call_operand.vmem [shape: f32[1,256], index: 1, kind: input, shape index: {}]
  %s2 = inlined_call_operand.vmem [shape: f32[1,256], index: 2, kind: input, shape index: {}]
  %s3 = inlined_call_operand.vmem [shape: f32[1,256], index: 3, kind: input, shape index: {}]
  %s4 = inlined_call_operand.vmem [shape: f32[2,256], index: 4, kind: input, shape index: {}]
  %s5 = inlined_call_operand.vmem [shape: bf16[48,24], index: 5, kind: input, shape index: {}]
  %s6 = inlined_call_operand.vmem [shape: f32[32,24], index: 6, kind: input, shape index: {}]
  %s7 = inlined_call_operand.hbm [shape: f32[1,256], index: 7, kind: output, shape index: {}]
  %s8 = sld [smem:[#allocation0]]
  $region42: #{_step_impl.1} parent=0
    _
  %s10 = ssub.s32 1, %s8
  %s11 = scalar_select 0, %s10, %s8
  $region1: #{_step_impl.1} parent=0
    #allocation2 [shape = 'u8[512]{0}', space=smem, size = 0x200, scoped, tag = 'input window, operand 0, single buffered']
    #allocation3 [shape = 's32[1]{0}', space=sflag, size = 0x4, scoped, tag = 'scoped memory for _step_impl.1']
    #allocation4 [shape = 's32[1]{0}', space=sflag, size = 0x4, scoped, tag = 'scoped memory for _step_impl.1']
    #allocation5 [shape = 'u8[1024]{0}', space=vmem, size = 0x400, scoped, tag = 'output window, operand 0, single buffered']
    %12 = vsyncpa [#allocation4], 0
    %13 = vsyncpa [#allocation3], 0
    // Predicated region
    $region2: #{_step_impl.1} parent=1 // pred_check
      _
    $region3: #{_step_impl.1} parent=1 // pred_check_branch
      %15 = sbr.rel (0) target = $region5
    $region4: #{_step_impl.1} parent=1 // pred_region
      %s17 = ssub.s32 16, 16
      %18 = vsyncadd [#allocation4], %s17
      %s20 = sshll.u32 %s0, 4
      %s21 = int_to_ptr.vmem [resolvable:$true] %s20
      %23 = dma.vmem_to_smem %s21, 16, [#allocation2], [#allocation4]
    $region5: #{_step_impl.1} parent=1 // pred_fallthru
      _
    // Predicated region
    $region6: #{_step_impl.1} parent=1 // pred_check
      _
    $region7: #{_step_impl.1} parent=1 // pred_check_branch
      %25 = sbr.rel (0) target = $region9
    $region8: #{_step_impl.1} parent=1 // pred_region
      _
    $region9: #{_step_impl.1} parent=1 // pred_fallthru
      _
    // Predicated region
    $region10: #{_step_impl.1} parent=1 // pred_check
      _
    $region11: #{_step_impl.1} parent=1 // pred_check_branch
      %27 = sbr.rel (0) target = $region13
    $region12: #{_step_impl.1} parent=1 // pred_region
      _
    $region13: #{_step_impl.1} parent=1 // pred_fallthru
      _
    // Predicated region
    $region14: #{_step_impl.1} parent=1 // pred_check
      _
    $region15: #{_step_impl.1} parent=1 // pred_check_branch
      %29 = sbr.rel (0) target = $region17
    $region16: #{_step_impl.1} parent=1 // pred_region
      _
    $region17: #{_step_impl.1} parent=1 // pred_fallthru
      _
    // Predicated region
    $region18: #{_step_impl.1} parent=1 // pred_check
      _
    $region19: #{_step_impl.1} parent=1 // pred_check_branch
      %31 = sbr.rel (0) target = $region21
    $region20: #{_step_impl.1} parent=1 // pred_region
      _
    $region21: #{_step_impl.1} parent=1 // pred_fallthru
      _
    // Predicated region
    $region22: #{_step_impl.1} parent=1 // pred_check
      _
    $region23: #{_step_impl.1} parent=1 // pred_check_branch
      %33 = sbr.rel (0) target = $region25
    $region24: #{_step_impl.1} parent=1 // pred_region
      _
    $region25: #{_step_impl.1} parent=1 // pred_fallthru
      _
    // Predicated region
    $region26: #{_step_impl.1} parent=1 // pred_check
      _
    $region27: #{_step_impl.1} parent=1 // pred_check_branch
      %35 = sbr.rel (0) target = $region29
    $region28: #{_step_impl.1} parent=1 // pred_region
      _
    $region29: #{_step_impl.1} parent=1 // pred_fallthru
      _
    // Predicated region
    $region30: #{_step_impl.1} parent=1 // pred_check
      _
    $region31: #{_step_impl.1} parent=1 // pred_check_branch
      %37 = sbr.rel (0) target = $region33
    $region32: #{_step_impl.1} parent=1 // pred_region
      %38 = dma.done [#allocation4], 16
    $region33: #{_step_impl.1} parent=1 // pred_fallthru
      _
    %39 = sfence
    %s41 = sld [smem:[#allocation2]]
    %s42 = sld [smem:[#allocation2 + $0x1]]
    %s43 = sld [smem:[#allocation2 + $0x2]]
    %s44 = sld [smem:[#allocation2 + $0x3]]
    %s45 = sld [smem:[#allocation2 + $0x4]]
    %v46 = vld [vmem:[%s1] sm:$0x3]
    %v47 = vld [vmem:[%s3] sm:$0x3]
    %v48 = vld [vmem:[%s2] sm:$0x3]
    %v49 = vsub.f32 %v46, %v48
    %v50 = vld [vmem:[%s4] ss:$2 sm:$0x3]
    %s51 = scalar_lea.vmem %s4, 1
    %v52 = vld [vmem:[%s51] ss:$2 sm:$0x3]
    %v53 = vstv %s41
    %v54 = vmul.f32 %v53, %v50
    %v55 = vmul.f32 %v54, %v47
    %v57 = vlaneseq
    %v58 = vshrl.u32 %v57, 7
    %v59 = vsub.s32 0, %v58
    %v60 = vrot.slane %v55, %v59
    %v61 = vlaneseq
    %v62 = vshrl.u32 %v61, 7
    %v63 = vsub.s32 1, %v62
    %v64 = vrot.slane %v55, %v63
    %v67 = vpack.c.bf16 %v60, %v60
    %v68 = vpack.c.bf16 %v64, %v64
    %v69 = vstv %s42
    %v70 = vmul.f32 %v69, %v52
    %v71 = vmul.f32 %v70, %v49
    %v73 = vlaneseq
    %v74 = vshrl.u32 %v73, 7
    %v75 = vsub.s32 0, %v74
    %v76 = vrot.slane %v71, %v75
    %v77 = vlaneseq
    %v78 = vshrl.u32 %v77, 7
    %v79 = vsub.s32 1, %v78
    %v80 = vrot.slane %v71, %v79
    %v83 = vpack.c.bf16 %v76, %v76
    %v84 = vpack.c.bf16 %v80, %v80
    %v85 = vstv %s43
    %v86 = vmul.f32 %v85, %v47
    %v88 = vlaneseq
    %v89 = vshrl.u32 %v88, 7
    %v90 = vsub.s32 0, %v89
    %v91 = vrot.slane %v86, %v90
    %v92 = vlaneseq
    %v93 = vshrl.u32 %v92, 7
    %v94 = vsub.s32 1, %v93
    %v95 = vrot.slane %v86, %v94
    %v98 = vpack.c.bf16 %v91, %v91
    %v99 = vpack.c.bf16 %v95, %v95
    %v100 = vstv %s44
    %v101 = vmul.f32 %v100, %v49
    %v103 = vlaneseq
    %v104 = vshrl.u32 %v103, 7
    %v105 = vsub.s32 0, %v104
    %v106 = vrot.slane %v101, %v105
    %v107 = vlaneseq
    %v108 = vshrl.u32 %v107, 7
    %v109 = vsub.s32 1, %v108
    %v110 = vrot.slane %v101, %v109
    %v113 = vpack.c.bf16 %v106, %v106
    %v114 = vpack.c.bf16 %v110, %v110
    %v115 = vld [vmem:[%s6] sm:$0xff]
    %v116 = vld [vmem:[%s6 + $0x8] sm:$0xff]
    %v117 = vld [vmem:[%s6 + $0x10] sm:$0xff]
    %v118 = vld [vmem:[%s6 + $0x18] sm:$0xff]
    %v119 = vpack.c.bf16 %v116, %v115
    %v120 = vpack.c.bf16 %v117, %v117
    %v121 = vpack.c.bf16 %v118, %v118
    %v122 = vld [vmem:[%s5] sm:$0xf]
    %v123 = vld [vmem:[%s5 + $0x4] sm:$0xf]
    %v124 = vld [vmem:[%s5 + $0x8] sm:$0xf]
    %v125 = vld [vmem:[%s5 + $0xc] sm:$0xf]
    %v126 = vld [vmem:[%s5 + $0x10] sm:$0xf]
    %v127 = vld [vmem:[%s5 + $0x14] sm:$0xf]
    %129 = vset.pattern.permute.xlu0 0
    %130 = vperm.xlu0 %129, %v119
    %v131 = vpop.permute.xlu0 %130
    %134 = vset.pattern.permute.xlu0 0
    %135 = vperm.xlu0 %134, %v120
    %v136 = vpop.permute.xlu0 %135
    %v139 = vpack.i.b16 %v67, %v67
    %v141 = vlaneseq
    %v142 = vshrl.u32 %v141, 7
    %v143 = vsub.s32 0, %v142
    %v144 = vrot.slane %v139, %v143
    %v146 = vpack.i.b16 %v68, %v68
    %v148 = vlaneseq
    %v149 = vshrl.u32 %v148, 7
    %v150 = vsub.s32 0, %v149
    %v151 = vrot.slane %v146, %v150
    %v152 = vmul.bf16 %v131, %v144
    %v153 = vmul.bf16 %v131, %v151
    %v154 = vmul.bf16 %v136, %v144
    %v155 = vmul.bf16 %v136, %v151
    %156 = vset.pattern.permute.xlu0 1
    %157 = vperm.xlu0 %156, %v119
    %v158 = vpop.permute.xlu0 %157
    %160 = vset.pattern.permute.xlu0 1
    %161 = vperm.xlu0 %160, %v120
    %v162 = vpop.permute.xlu0 %161
    %v165 = vpack.i.b16 %v83, %v83
    %v167 = vlaneseq
    %v168 = vshrl.u32 %v167, 7
    %v169 = vsub.s32 0, %v168
    %v170 = vrot.slane %v165, %v169
    %v172 = vpack.i.b16 %v84, %v84
    %v174 = vlaneseq
    %v175 = vshrl.u32 %v174, 7
    %v176 = vsub.s32 0, %v175
    %v177 = vrot.slane %v172, %v176
    %v178 = vmul.bf16 %v158, %v170
    %v179 = vmul.bf16 %v158, %v177
    %v180 = vmul.bf16 %v162, %v170
    %v181 = vmul.bf16 %v162, %v177
    %v182 = vadd.bf16 %v152, %v178
    %v183 = vadd.bf16 %v153, %v179
    %v184 = vadd.bf16 %v154, %v180
    %v185 = vadd.bf16 %v155, %v181
    %186 = vset.pattern.permute.xlu0 2
    %187 = vperm.xlu0 %186, %v119
    %v188 = vpop.permute.xlu0 %187
    %190 = vset.pattern.permute.xlu0 2
    %191 = vperm.xlu0 %190, %v120
    %v192 = vpop.permute.xlu0 %191
    %v195 = vpack.i.b16 %v98, %v98
    %v197 = vlaneseq
    %v198 = vshrl.u32 %v197, 7
    %v199 = vsub.s32 0, %v198
    %v200 = vrot.slane %v195, %v199
    %v202 = vpack.i.b16 %v99, %v99
    %v204 = vlaneseq
    %v205 = vshrl.u32 %v204, 7
    %v206 = vsub.s32 0, %v205
    %v207 = vrot.slane %v202, %v206
    %v208 = vmul.bf16 %v188, %v200
    %v209 = vmul.bf16 %v188, %v207
    %v210 = vmul.bf16 %v192, %v200
    %v211 = vmul.bf16 %v192, %v207
    %v212 = vadd.bf16 %v182, %v208
    %v213 = vadd.bf16 %v183, %v209
    %v214 = vadd.bf16 %v184, %v210
    %v215 = vadd.bf16 %v185, %v211
    %216 = vset.pattern.permute.xlu0 3
    %217 = vperm.xlu0 %216, %v119
    %v218 = vpop.permute.xlu0 %217
    %220 = vset.pattern.permute.xlu0 3
    %221 = vperm.xlu0 %220, %v120
    %v222 = vpop.permute.xlu0 %221
    %v225 = vpack.i.b16 %v113, %v113
    %v227 = vlaneseq
    %v228 = vshrl.u32 %v227, 7
    %v229 = vsub.s32 0, %v228
    %v230 = vrot.slane %v225, %v229
    %v232 = vpack.i.b16 %v114, %v114
    %v234 = vlaneseq
    %v235 = vshrl.u32 %v234, 7
    %v236 = vsub.s32 0, %v235
    %v237 = vrot.slane %v232, %v236
    %v238 = vmul.bf16 %v218, %v230
    %v239 = vmul.bf16 %v218, %v237
    %v240 = vmul.bf16 %v222, %v230
    %v241 = vmul.bf16 %v222, %v237
    %v242 = vadd.bf16 %v212, %v238
    %v243 = vadd.bf16 %v213, %v239
    %v244 = vadd.bf16 %v214, %v240
    %v245 = vadd.bf16 %v215, %v241
    %246 = vset.pattern.permute.xlu0 4
    %247 = vperm.xlu0 %246, %v119
    %v248 = vpop.permute.xlu0 %247
    %250 = vset.pattern.permute.xlu0 4
    %251 = vperm.xlu0 %250, %v120
    %v252 = vpop.permute.xlu0 %251
    %v254 = vadd.bf16 %v242, %v248
    %v255 = vadd.bf16 %v243, %v248
    %v256 = vadd.bf16 %v244, %v252
    %v257 = vadd.bf16 %v245, %v252
    %v258 = vmax.bf16 %v254, 0
    %v259 = vmax.bf16 %v255, 0
    %v260 = vmax.bf16 %v256, 0
    %v261 = vmax.bf16 %v257, 0
    %v265 = vunpack.c.l.b16 %v122
    %v266 = vunpack.c.l.b16 %v123
    %v267 = vunpack.c.l.b16 %v124
    %v268 = vpack.c.b16 %v266, %v265
    %v269 = vpack.c.b16 %v267, %v267
    %vm270 = vcmask 195584
    %v272 = vsel %vm270, %v268, 0
    %v275 = vsel %vm270, %v269, 0
    %vm277 = vcmask 1043456
    %v279 = vsel %vm277, %v260, 0
    %v282 = vsel %vm277, %v261, 0
    %284 = vmatprep.subr.bf16.mxu0 %v259
    %285 = vmatpush1.bf16.msra.mxu0 %v258
    %286 = vmatprep.subr.bf16.mxu0 %v282
    %287 = vmatpush1.bf16.msra.mxu0 %v279
    %288 = vmatprep.subr.bf16.mxu0 0
    %289 = vmatpush1.bf16.msra.mxu0 0
    %290 = vmatprep.subr.bf16.mxu0 0
    %291 = vmatpush1.bf16.msra.mxu0 0
    %292 = vmatprep.subr.bf16.mxu0 0
    %293 = vmatpush1.bf16.msra.mxu0 0
    %294 = vmatprep.subr.bf16.mxu0 0
    %295 = vmatpush1.bf16.msra.mxu0 0
    %296 = vmatprep.subr.bf16.mxu0 0
    %297 = vmatpush1.bf16.msra.mxu0 0
    %298 = vmatprep.subr.bf16.mxu0 0
    %299 = vmatpush1.bf16.msra.mxu0 0
    %300 = vmatprep.subr.bf16.mxu0 0
    %301 = vmatpush1.bf16.msra.mxu0 0
    %302 = vmatprep.subr.bf16.mxu0 0
    %303 = vmatpush1.bf16.msra.mxu0 0
    %304 = vmatprep.subr.bf16.mxu0 0
    %305 = vmatpush1.bf16.msra.mxu0 0
    %306 = vmatprep.subr.bf16.mxu0 0
    %307 = vmatpush1.bf16.msra.mxu0 0
    %308 = vmatprep.subr.bf16.mxu0 0
    %309 = vmatpush1.bf16.msra.mxu0 0
    %310 = vmatprep.subr.bf16.mxu0 0
    %311 = vmatpush1.bf16.msra.mxu0 0
    %312 = vmatprep.subr.bf16.mxu0 0
    %313 = vmatpush1.bf16.msra.mxu0 0
    %314 = vmatprep.subr.bf16.mxu0 0
    %315 = vmatpush1.bf16.msra.mxu0 0
    %316 = vmatprep.mubr.bf16.mxu0 0
    %317 = vmatmul.mubr.bf16.gmra.mrb[0].mxu0 %v272
    %v318 = vpop.f32.mrb[0].mxu0
    %v319 = vadd.f32 0.0, %v318
    %v320 = vpop.f32.mrb[0].mxu0
    %v321 = vadd.f32 0.0, %v320
    %v322 = vpop.f32.mrb[0].mxu0
    %v323 = vadd.f32 0.0, %v322
    %v324 = vpop.f32.mrb[0].mxu0
    %v325 = vadd.f32 0.0, %v324
    %326 = vmatprep.mubr.bf16.mxu0 0
    %327 = vmatmul.mubr.bf16.gmra.mrb[0].mxu0 %v275
    %v328 = vpop.f32.mrb[0].mxu0
    %v329 = vadd.f32 0.0, %v328
    %v330 = vpop.f32.mrb[0].mxu0
    %v331 = vadd.f32 0.0, %v330
    %v332 = vpop.f32.mrb[0].mxu0
    %v333 = vpop.f32.mrb[0].mxu0
    %334 = vdwg.mxu0
    %v335 = vpack.c.bf16 %v323, %v319
    %v336 = vpack.c.bf16 %v325, %v321
    %v337 = vpack.c.bf16 %v329, %v329
    %v338 = vpack.c.bf16 %v331, %v331
    %339 = vset.pattern.permute.xlu0 5
    %340 = vperm.xlu0 %339, %v119
    %v341 = vpop.permute.xlu0 %340
    %343 = vset.pattern.permute.xlu0 5
    %344 = vperm.xlu0 %343, %v120
    %v345 = vpop.permute.xlu0 %344
    %v347 = vadd.bf16 %v335, %v341
    %v348 = vadd.bf16 %v336, %v341
    %v349 = vadd.bf16 %v337, %v345
    %v350 = vadd.bf16 %v338, %v345
    %v351 = vmax.bf16 %v347, 0
    %v352 = vmax.bf16 %v348, 0
    %v353 = vmax.bf16 %v349, 0
    %v354 = vmax.bf16 %v350, 0
    %v358 = vunpack.c.l.b16 %v125
    %v359 = vunpack.c.l.b16 %v126
    %v360 = vunpack.c.l.b16 %v127
    %v361 = vpack.c.b16 %v359, %v358
    %v362 = vpack.c.b16 %v360, %v360
    %v364 = vsel %vm270, %v361, 0
    %v367 = vsel %vm270, %v362, 0
    %v370 = vsel %vm277, %v353, 0
    %v373 = vsel %vm277, %v354, 0
    %375 = vmatprep.subr.bf16.mxu0 %v352
    %376 = vmatpush1.bf16.msra.mxu0 %v351
    %377 = vmatprep.subr.bf16.mxu0 %v373
    %378 = vmatpush1.bf16.msra.mxu0 %v370
    %379 = vmatprep.subr.bf16.mxu0 0
    %380 = vmatpush1.bf16.msra.mxu0 0
    %381 = vmatprep.subr.bf16.mxu0 0
    %382 = vmatpush1.bf16.msra.mxu0 0
    %383 = vmatprep.subr.bf16.mxu0 0
    %384 = vmatpush1.bf16.msra.mxu0 0
    %385 = vmatprep.subr.bf16.mxu0 0
    %386 = vmatpush1.bf16.msra.mxu0 0
    %387 = vmatprep.subr.bf16.mxu0 0
    %388 = vmatpush1.bf16.msra.mxu0 0
    %389 = vmatprep.subr.bf16.mxu0 0
    %390 = vmatpush1.bf16.msra.mxu0 0
    %391 = vmatprep.subr.bf16.mxu0 0
    %392 = vmatpush1.bf16.msra.mxu0 0
    %393 = vmatprep.subr.bf16.mxu0 0
    %394 = vmatpush1.bf16.msra.mxu0 0
    %395 = vmatprep.subr.bf16.mxu0 0
    %396 = vmatpush1.bf16.msra.mxu0 0
    %397 = vmatprep.subr.bf16.mxu0 0
    %398 = vmatpush1.bf16.msra.mxu0 0
    %399 = vmatprep.subr.bf16.mxu0 0
    %400 = vmatpush1.bf16.msra.mxu0 0
    %401 = vmatprep.subr.bf16.mxu0 0
    %402 = vmatpush1.bf16.msra.mxu0 0
    %403 = vmatprep.subr.bf16.mxu0 0
    %404 = vmatpush1.bf16.msra.mxu0 0
    %405 = vmatprep.subr.bf16.mxu0 0
    %406 = vmatpush1.bf16.msra.mxu0 0
    %407 = vmatprep.mubr.bf16.mxu0 0
    %408 = vmatmul.mubr.bf16.gmra.mrb[0].mxu0 %v364
    %v409 = vpop.f32.mrb[0].mxu0
    %v410 = vadd.f32 0.0, %v409
    %v411 = vpop.f32.mrb[0].mxu0
    %v412 = vadd.f32 0.0, %v411
    %v413 = vpop.f32.mrb[0].mxu0
    %v414 = vadd.f32 0.0, %v413
    %v415 = vpop.f32.mrb[0].mxu0
    %v416 = vadd.f32 0.0, %v415
    %417 = vmatprep.mubr.bf16.mxu0 0
    %418 = vmatmul.mubr.bf16.gmra.mrb[0].mxu0 %v367
    %v419 = vpop.f32.mrb[0].mxu0
    %v420 = vadd.f32 0.0, %v419
    %v421 = vpop.f32.mrb[0].mxu0
    %v422 = vadd.f32 0.0, %v421
    %v423 = vpop.f32.mrb[0].mxu0
    %v424 = vpop.f32.mrb[0].mxu0
    %425 = vdwg.mxu0
    %v426 = vpack.c.bf16 %v414, %v410
    %v427 = vpack.c.bf16 %v416, %v412
    %v428 = vpack.c.bf16 %v420, %v420
    %v429 = vpack.c.bf16 %v422, %v422
    %430 = vset.pattern.permute.xlu0 6
    %431 = vperm.xlu0 %430, %v119
    %v432 = vpop.permute.xlu0 %431
    %434 = vset.pattern.permute.xlu0 6
    %435 = vperm.xlu0 %434, %v120
    %v436 = vpop.permute.xlu0 %435
    %v438 = vadd.bf16 %v426, %v432
    %v439 = vadd.bf16 %v427, %v432
    %v440 = vadd.bf16 %v428, %v436
    %v441 = vadd.bf16 %v429, %v436
    %v442 = vmax.bf16 %v438, 0
    %v443 = vmax.bf16 %v439, 0
    %v444 = vmax.bf16 %v440, 0
    %v445 = vmax.bf16 %v441, 0
    %447 = vset.pattern.permute.xlu0 0
    %448 = vperm.xlu0 %447, %v118
    %v449 = vpop.permute.xlu0 %448
    %v450 = vrot.slane %v449, 1
    %v453 = vsel %vm270, %v121, 0
    %v456 = vsel %vm277, %v444, 0
    %v459 = vsel %vm277, %v445, 0
    %461 = vmatprep.subr.bf16.mxu0 %v443
    %462 = vmatpush1.bf16.msra.mxu0 %v442
    %463 = vmatprep.subr.bf16.mxu0 %v459
    %464 = vmatpush1.bf16.msra.mxu0 %v456
    %465 = vmatprep.subr.bf16.mxu0 0
    %466 = vmatpush1.bf16.msra.mxu0 0
    %467 = vmatprep.subr.bf16.mxu0 0
    %468 = vmatpush1.bf16.msra.mxu0 0
    %469 = vmatprep.subr.bf16.mxu0 0
    %470 = vmatpush1.bf16.msra.mxu0 0
    %471 = vmatprep.subr.bf16.mxu0 0
    %472 = vmatpush1.bf16.msra.mxu0 0
    %473 = vmatprep.subr.bf16.mxu0 0
    %474 = vmatpush1.bf16.msra.mxu0 0
    %475 = vmatprep.subr.bf16.mxu0 0
    %476 = vmatpush1.bf16.msra.mxu0 0
    %477 = vmatprep.subr.bf16.mxu0 0
    %478 = vmatpush1.bf16.msra.mxu0 0
    %479 = vmatprep.subr.bf16.mxu0 0
    %480 = vmatpush1.bf16.msra.mxu0 0
    %481 = vmatprep.subr.bf16.mxu0 0
    %482 = vmatpush1.bf16.msra.mxu0 0
    %483 = vmatprep.subr.bf16.mxu0 0
    %484 = vmatpush1.bf16.msra.mxu0 0
    %485 = vmatprep.subr.bf16.mxu0 0
    %486 = vmatpush1.bf16.msra.mxu0 0
    %487 = vmatprep.subr.bf16.mxu0 0
    %488 = vmatpush1.bf16.msra.mxu0 0
    %489 = vmatprep.subr.bf16.mxu0 0
    %490 = vmatpush1.bf16.msra.mxu0 0
    %491 = vmatprep.subr.bf16.mxu0 0
    %492 = vmatpush1.bf16.msra.mxu0 0
    %493 = vmatprep.mubr.bf16.mxu0 0
    %494 = vmatmul.mubr.bf16.gmra.mrb[0].mxu0 %v453
    %v495 = vpop.f32.mrb[0].mxu0
    %v496 = vadd.f32 %v450, %v495
    %v497 = vpop.f32.mrb[0].mxu0
    %v498 = vadd.f32 %v450, %v497
    %v499 = vpop.f32.mrb[0].mxu0
    %v500 = vpop.f32.mrb[0].mxu0
    %501 = vdwg.mxu0
    %v502 = vstv %s45
    %v503 = vmul.f32 %v496, %v502
    %v504 = vmul.f32 %v498, %v502
    %v507 = vcombine.low %v503, %v504
    %v509 = vunpack.c.l.s4 1966171168
    %v510 = vunpack.c.0.s8 %v509
    %v511 = vlaneseq
    %v512 = vshrl.u32 %v511, 7
    %v513 = vsub.s32 %v510, %v512
    %v514 = vrot.slane %v507, %v513
    %v516 = vunpack.c.l.s4 1966171168
    %v517 = vunpack.c.0.s8 %v516
    %v518 = vlaneseq
    %v519 = vshrl.u32 %v518, 7
    %v520 = vsub.s32 %v517, %v519
    %v521 = vrot.slane %v514, %v520
    %v523 = vadd.f32 %v46, %v521
    %v524 = vlaneseq
    %vm525 = vcmp.ge.s32.totalorder %v524, 0
    %vm526 = vcmp.lt.s32.totalorder %v524, 256
    %vm527 = vmand %vm525, %vm526
    %528 = vst.msk [vmem:[#allocation5] sm:$0x3] %vm527, %v523
    // Predicated region
    $region34: #{_step_impl.1} parent=1 // pred_check
      _
    $region35: #{_step_impl.1} parent=1 // pred_check_branch
      %530 = sbr.rel (0) target = $region37
    $region36: #{_step_impl.1} parent=1 // pred_region
      %s532 = ssub.s32 32, 32
      %533 = vsyncadd [#allocation3], %s532
      %s535 = sshll.u32 [#allocation5], 4
      %s536 = int_to_ptr.vmem [resolvable:$true] %s535
      %538 = dma.vmem_to_hbm [thread:$0]  %s536, 32, %s7, [#allocation3]
    $region37: #{_step_impl.1} parent=1 // pred_fallthru
      _
    // Predicated region
    $region38: #{_step_impl.1} parent=1 // pred_check
      _
    $region39: #{_step_impl.1} parent=1 // pred_check_branch
      %540 = sbr.rel (0) target = $region41
    $region40: #{_step_impl.1} parent=1 // pred_region
      %541 = dma.done [#allocation3], 32
    $region41: #{_step_impl.1} parent=1 // pred_fallthru
      _
    %542 = vsyncpa [#allocation3], 1
    %543 = vsyncpa [#allocation4], 1

</llo_original>
